<compile_context>
chip_gen: v7x
topology: tpu7x:2x2x1
jax: 0.10.0
libtpu: 0.0.40
codegen_flags: <defaults>
</compile_context>

<pallas_src>
import numpy as np
import jax
import jax.numpy as jnp
from jax import lax
from jax.experimental import pallas as pl
from jax.experimental.pallas import tpu as pltpu


# ----------------------------------------------------------------------------
# Pallas kernel
# ----------------------------------------------------------------------------
def _make_yolo_loss_kernel(B, C, lambda_coord, lambda_noobj, n_cells, lb):
    NE = B * 5 + C
    # Contract the minor (element) dims of both operands: out = eye @ x^T.
    dims_nt = (((1,), (1,)), ((), ()))

    def kernel(p_ref, t_ref, out_ref):
        # Natural-layout (lb, NE) tiles; cast in-kernel so bf16 inputs stay bf16
        # on the HBM wire (for f32 inputs the astype is a no-op).
        p_nat = p_ref[...].astype(jnp.float32)
        t_nat = t_ref[...].astype(jnp.float32)

        # Identity matrix built from 2-D iotas (1-D iota is not supported on TPU).
        rows = lax.broadcasted_iota(jnp.int32, (NE, NE), 0)
        cols = lax.broadcasted_iota(jnp.int32, (NE, NE), 1)
        eye = (rows == cols).astype(jnp.float32)

        # Transpose via the MXU: out[e, n] = sum_k eye[e, k] * x[n, k]  (exact).
        p = lax.dot_general(eye, p_nat, dims_nt, preferred_element_type=jnp.float32)
        t = lax.dot_general(eye, t_nat, dims_nt, preferred_element_type=jnp.float32)

        # Tail-block masking (replaces the wrapper-side jnp.pad HBM pass): lanes
        # beyond the real cell count carry garbage from the clipped DMA; zero
        # them before the conf tests and before any accumulation.  jnp.where
        # also discards NaN/Inf garbage.
        lane = lax.broadcasted_iota(jnp.int32, (1, lb), 1)
        valid = (pl.program_id(0) * lb + lane) < n_cells
        p = jnp.where(valid, p, 0.0)
        t = jnp.where(valid, t, 0.0)

        # Reference uses element column 5 as the "object present" indicator.
        conf = t[5:6, :]                                   # (1, lb)
        is_coord = (conf > 0).astype(jnp.float32)          # cells containing objects
        is_noobj = (conf == 0).astype(jnp.float32)         # cells without objects

        # ------------- per-box corner stacks: lo=(x1,y1), hi=(x2,y2) --------
        plo, phi, parea = [], [], []
        tlo, thi, tarea = [], [], []
        for i in range(B):
            for src, lo_l, hi_l, ar_l in ((p, plo, phi, parea),
                                          (t, tlo, thi, tarea)):
                xy = src[i * 5:i * 5 + 2, :]               # (2, lb)
                wh = src[i * 5 + 2:i * 5 + 4, :]           # (2, lb)
                wh2 = wh * wh                              # reference: corner = c -/+ (w,h)**2
                lo = xy - wh2
                hi = xy + wh2
                # NOTE: d = hi - lo is kept (not simplified to 2*wh2) so the
                # area arithmetic matches the reference bit-for-bit and the
                # responsibility argmax tie-breaking cannot flip.
                d = hi - lo
                lo_l.append(lo)
                hi_l.append(hi)
                ar_l.append(d[0:1, :] * d[1:2, :])         # (1, lb)

        # ------------- IOU of pred box i vs target box j, per cell ----------
        iou = [[None] * B for _ in range(B)]
        for i in range(B):
            for j in range(B):
                tl = jnp.maximum(plo[i], tlo[j])           # (2, lb)
                br = jnp.minimum(phi[i], thi[j])           # (2, lb)
                whd = jnp.maximum(br - tl, 0.0)
                inter = whd[0:1, :] * whd[1:2, :]          # (1, lb)
                denom = parea[i] + tarea[j] - inter
                # Guard zero-area (masked / degenerate) cells against NaN; real
                # cells keep exact-division parity with the reference argmax
                # (pl.reciprocal(approx=True) deliberately NOT used).
                denom = jnp.where(denom != 0.0, denom, 1.0)
                iou[i][j] = inter / denom

        # "responsible" pred box per target box: first argmax over pred axis
        resp = [jnp.zeros_like(conf) for _ in range(B)]
        for j in range(B):
            max_j = iou[0][j]
            for i in range(1, B):
                max_j = jnp.maximum(max_j, iou[i][j])
            found = jnp.zeros_like(conf)
            for i in range(B):
                is_arg = jnp.where((iou[i][j] >= max_j) & (found == 0.0), 1.0, 0.0)
                found = found + is_arg
                resp[i] = jnp.maximum(resp[i], is_arg)

        # ------------- fused, per-lane accumulation of all loss terms -------
        diff = p - t
        sqdiff = diff * diff                               # (NE, lb)

        # class loss (coord cells only), weight 1
        lane_acc = is_coord * jnp.sum(sqdiff[B * 5:, :], axis=0, keepdims=True)

        for i in range(B):
            m = is_coord * resp[i]                         # (1, lb)
            conf_sq = sqdiff[i * 5 + 4:i * 5 + 5, :]       # confidence column
            # no-object loss (lambda_noobj) + containing loss (weight 1)
            lane_acc = lane_acc + (lambda_noobj * is_noobj + m) * conf_sq
            # localization loss (lambda_coord) over x, y, w, h
            lane_acc = lane_acc + lambda_coord * m * jnp.sum(
                sqdiff[i * 5:i * 5 + 4, :], axis=0, keepdims=True)

        # lane-dense partial-sum store; final (tiny) reduction in the wrapper
        out_ref[...] = lane_acc[None]

    return kernel


def _pick_tile_params():
    """Generation-dependent lane-block cap and scoped VMEM limit."""
    kind = ""
    try:
        kind = jax.devices()[0].device_kind.lower()
    except Exception:
        pass
    if any(g in kind for g in ("v4", "v5", "v6")):
        # 128 MiB physical VMEM: go big, raise the (16/32 MiB default) scoped limit.
        return 16384, 96 * 1024 * 1024
    # v7x (or unknown): 64 MiB physical VMEM -> smaller cap, conservative limit.
    return 8192, 48 * 1024 * 1024


def yolo_loss_pallas(pred, target, *, B, C, lambda_coord, lambda_noobj):
    NE = B * 5 + C
    batch = target.shape[0]
    p = pred.reshape(batch, -1, NE)
    t = target.reshape(batch, -1, NE)
    S2 = p.shape[1]
    N = batch * S2

    # Natural (cells, elements) layout: pure reshapes, no transpose / pad pass.
    p = p.reshape(N, NE)
    t = t.reshape(N, NE)

    cap, vmem_limit = _pick_tile_params()

    # Lane block = cells per grid step.  Big blocks amortize per-step overhead;
    # the cap keeps the double-buffered (lb, NE) input tiles (lane-padded to 128)
    # plus f32 temporaries inside the scoped VMEM limit.  When there is enough
    # work, produce at least 2 blocks so v7x's two TensorCores both get a share.
    if N >= 2048:
        lb = min(cap, 8 * pl.cdiv(pl.cdiv(N, 2), 8))
    else:
        lb = max(8, 8 * pl.cdiv(N, 8))
    num_blocks = pl.cdiv(N, lb)

    kernel = _make_yolo_loss_kernel(B, C, float(lambda_coord), float(lambda_noobj),
                                    N, lb)

    out = pl.pallas_call(
        kernel,
        out_shape=jax.ShapeDtypeStruct((num_blocks, 1, lb), jnp.float32),
        grid=(num_blocks,),
        in_specs=[
            pl.BlockSpec((lb, NE), lambda b: (b, 0)),
            pl.BlockSpec((lb, NE), lambda b: (b, 0)),
        ],
        out_specs=pl.BlockSpec((1, 1, lb), lambda b: (b, 0, 0)),
        compiler_params=pltpu.CompilerParams(
            dimension_semantics=("parallel",),   # independent per-block partials
            vmem_limit_bytes=vmem_limit,
        ),
    )(p, t)
    return jnp.sum(out)


# ----------------------------------------------------------------------------
# NumPy reference that mirrors the PyTorch code (boolean-mask gathers + loops)
# ----------------------------------------------------------------------------
def _compute_iou_np(b1, b2):
    b1x1y1 = b1[:, :2] - b1[:, 2:] ** 2
    b1x2y2 = b1[:, :2] + b1[:, 2:] ** 2
    b2x1y1 = b2[:, :2] - b2[:, 2:] ** 2
    b2x2y2 = b2[:, :2] + b2[:, 2:] ** 2
    box1 = np.concatenate([b1x1y1, b1x2y2], axis=1)
    box2 = np.concatenate([b2x1y1, b2x2y2], axis=1)
    tl = np.maximum(box1[:, None, :2], box2[None, :, :2])
    br = np.minimum(box1[:, None, 2:], box2[None, :, 2:])
    wh = np.maximum(br - tl, 0.0)
    inter = wh[:, :, 0] * wh[:, :, 1]
    area1 = (box1[:, 2] - box1[:, 0]) * (box1[:, 3] - box1[:, 1])
    area2 = (box2[:, 2] - box2[:, 0]) * (box2[:, 3] - box2[:, 1])
    return inter / (area1[:, None] + area2[None, :] - inter)


def yolo_loss_reference(pred, target, *, B, C, lambda_coord, lambda_noobj):
    NE = B * 5 + C
    batch = target.shape[0]
    t = np.asarray(target, np.float32).reshape(batch, -1, NE)
    p = np.asarray(pred, np.float32).reshape(batch, -1, NE)
    coord = t[:, :, 5] > 0
    noobj = t[:, :, 5] == 0

    coord_t, coord_p = t[coord], p[coord]
    class_loss = np.sum((coord_p[:, B * 5:] - coord_t[:, B * 5:]) ** 2)

    noobj_t, noobj_p = t[noobj], p[noobj]
    conf_cols = [i * 5 + 4 for i in range(B)]
    noobj_loss = np.sum((noobj_p[:, conf_cols] - noobj_t[:, conf_cols]) ** 2)

    box_p = coord_p[:, :B * 5].reshape(-1, 5)
    box_t = coord_t[:, :B * 5].reshape(-1, 5)
    resp = np.zeros(box_t.shape[0], dtype=bool)
    for i in range(0, box_t.shape[0], B):
        iou = _compute_iou_np(box_p[i:i + B, :4], box_t[i:i + B, :4])
        max_index = np.argmax(iou, axis=0)
        resp[i + max_index] = True
    bp, bt = box_p[resp], box_t[resp]
    contain = np.sum((bp[:, 4] - bt[:, 4]) ** 2)
    loc = np.sum((bp[:, :2] - bt[:, :2]) ** 2) + np.sum((bp[:, 2:4] - bt[:, 2:4]) ** 2)
    return lambda_coord * loc + contain + lambda_noobj * noobj_loss + class_loss


# ----------------------------------------------------------------------------
def _make_inputs(key, batch, S, B, C):
    NE = B * 5 + C
    k_t, k_m, k_p = jax.random.split(key, 3)
    # target: positive box params; half the cells marked "no object" (col 5 == 0)
    target = jax.random.uniform(k_t, (batch, S, S, NE), minval=0.1, maxval=1.0,
                                dtype=jnp.float32)
    obj_mask = jax.random.bernoulli(k_m, 0.5, (batch, S, S))
    target = target.at[..., 5].set(jnp.where(obj_mask, target[..., 5], 0.0))
    # pred: [batch, S*S*(B*5+C)] as in the module's docstring
    pred = jax.random.normal(k_p, (batch, S * S * NE), dtype=jnp.float32)
    return pred, target


if __name__ == "__main__":
    B, C = 2, 20
    lambda_coord, lambda_noobj = 5.0, 0.5
    key = jax.random.PRNGKey(0)
    k1, k2 = jax.random.split(key)

    # Test 1: small canonical shapes (batch=2, S=4) -> single block.
    # Test 2: batch=47, S=7 -> 2303 cells -> two grid blocks with a partial tail,
    #         exercising the in-kernel tail masking and the "parallel" grid axis.
    cases = [(k1, 2, 4), (k2, 47, 7)]
    for kk, batch, S in cases:
        pred, target = _make_inputs(kk, batch, S, B, C)
        loss = yolo_loss_pallas(pred, target, B=B, C=C,
                                lambda_coord=lambda_coord,
                                lambda_noobj=lambda_noobj)
        loss = jax.block_until_ready(loss)
        ref = yolo_loss_reference(np.asarray(jax.device_get(pred)),
                                  np.asarray(jax.device_get(target)),
                                  B=B, C=C,
                                  lambda_coord=lambda_coord,
                                  lambda_noobj=lambda_noobj)
        assert np.isclose(float(loss), float(ref), rtol=1e-4, atol=1e-3), (
            batch, S, float(loss), float(ref))

    print("KERNEL_OK")
</pallas_src>

<mosaic_0001>
module attributes {stable_mosaic.version = 11 : i64} {
  func.func @kernel(%arg0: i32, %arg1: memref<32x30xf32, #tpu.memory_space<vmem>>, %arg2: memref<32x30xf32, #tpu.memory_space<vmem>>, %arg3: memref<1x1x32xf32, #tpu.memory_space<vmem>>) attributes {dimension_semantics = [#tpu.dimension_semantics<parallel>], iteration_bounds = array<i64: 1>, scalar_prefetch = 0 : i64, scratch_operands = 0 : i64, tpu.core_type = #tpu.core_type<tc>, window_params = [{transform_indices = @transform_0, window_bounds = array<i64: 32, 30>}, {transform_indices = @transform_1, window_bounds = array<i64: 32, 30>}, {transform_indices = @transform_2, window_bounds = array<i64: 1, 1, 32>}]} {
    %c0 = arith.constant 0 : index
    %c0_0 = arith.constant 0 : index
    %0 = vector.load %arg1[%c0, %c0_0] : memref<32x30xf32, #tpu.memory_space<vmem>>, vector<32x30xf32>
    %c0_1 = arith.constant 0 : index
    %c0_2 = arith.constant 0 : index
    %1 = vector.load %arg2[%c0_1, %c0_2] : memref<32x30xf32, #tpu.memory_space<vmem>>, vector<32x30xf32>
    %2 = tpu.iota {dimensions = array<i32: 0>} : vector<30x30xi32>
    %3 = tpu.iota {dimensions = array<i32: 1>} : vector<30x30xi32>
    %4 = arith.cmpi eq, %2, %3 : vector<30x30xi32>
    %5 = arith.extui %4 : vector<30x30xi1> to vector<30x30xi32>
    %6 = arith.sitofp %5 : vector<30x30xi32> to vector<30x30xf32>
    %cst = arith.constant dense<0.000000e+00> : vector<30x32xf32>
    %7 = tpu.matmul %6, %0, %cst {dimension_numbers = #tpu.dot_dimension_numbers<[1], [1], [0], [0], [0, 0, 1, 0], [], []>} : vector<30x30xf32>, vector<32x30xf32>, vector<30x32xf32> -> vector<30x32xf32>
    %cst_3 = arith.constant dense<0.000000e+00> : vector<30x32xf32>
    %8 = tpu.matmul %6, %1, %cst_3 {dimension_numbers = #tpu.dot_dimension_numbers<[1], [1], [0], [0], [0, 0, 1, 0], [], []>} : vector<30x30xf32>, vector<32x30xf32>, vector<30x32xf32> -> vector<30x32xf32>
    %9 = tpu.iota {dimensions = array<i32: 1>} : vector<1x32xi32>
    %c32_i32 = arith.constant 32 : i32
    %10 = arith.muli %arg0, %c32_i32 : i32
    %11 = vector.broadcast %10 : i32 to vector<1x32xi32>
    %12 = arith.addi %11, %9 : vector<1x32xi32>
    %c32_i32_4 = arith.constant 32 : i32
    %13 = vector.broadcast %c32_i32_4 : i32 to vector<1x32xi32>
    %14 = arith.cmpi slt, %12, %13 : vector<1x32xi32>
    %cst_5 = arith.constant 0.000000e+00 : f32
    %15 = vector.shape_cast %14 : vector<1x32xi1> to vector<1x32xi1>
    %16 = vector.broadcast %15 : vector<1x32xi1> to vector<30x32xi1>
    %17 = vector.broadcast %cst_5 : f32 to vector<30x32xf32>
    %18 = arith.select %16, %7, %17 : vector<30x32xi1>, vector<30x32xf32>
    %cst_6 = arith.constant 0.000000e+00 : f32
    %19 = vector.shape_cast %14 : vector<1x32xi1> to vector<1x32xi1>
    %20 = vector.broadcast %19 : vector<1x32xi1> to vector<30x32xi1>
    %21 = vector.broadcast %cst_6 : f32 to vector<30x32xf32>
    %22 = arith.select %20, %8, %21 : vector<30x32xi1>, vector<30x32xf32>
    %23 = vector.extract_strided_slice %22 {offsets = [5, 0], sizes = [1, 32], strides = [1, 1]} : vector<30x32xf32> to vector<1x32xf32>
    %cst_7 = arith.constant 0.000000e+00 : f32
    %24 = vector.broadcast %cst_7 : f32 to vector<1x32xf32>
    %25 = arith.cmpf ogt, %23, %24 : vector<1x32xf32>
    %26 = arith.extui %25 : vector<1x32xi1> to vector<1x32xi32>
    %27 = arith.sitofp %26 : vector<1x32xi32> to vector<1x32xf32>
    %cst_8 = arith.constant 0.000000e+00 : f32
    %28 = vector.broadcast %cst_8 : f32 to vector<1x32xf32>
    %29 = arith.cmpf oeq, %23, %28 : vector<1x32xf32>
    %30 = arith.extui %29 : vector<1x32xi1> to vector<1x32xi32>
    %31 = arith.sitofp %30 : vector<1x32xi32> to vector<1x32xf32>
    %32 = vector.extract_strided_slice %18 {offsets = [0, 0], sizes = [2, 32], strides = [1, 1]} : vector<30x32xf32> to vector<2x32xf32>
    %33 = vector.extract_strided_slice %18 {offsets = [2, 0], sizes = [2, 32], strides = [1, 1]} : vector<30x32xf32> to vector<2x32xf32>
    %34 = arith.mulf %33, %33 : vector<2x32xf32>
    %35 = arith.subf %32, %34 : vector<2x32xf32>
    %36 = arith.addf %32, %34 : vector<2x32xf32>
    %37 = arith.subf %36, %35 : vector<2x32xf32>
    %38 = vector.extract_strided_slice %37 {offsets = [0, 0], sizes = [1, 32], strides = [1, 1]} : vector<2x32xf32> to vector<1x32xf32>
    %39 = vector.extract_strided_slice %37 {offsets = [1, 0], sizes = [1, 32], strides = [1, 1]} : vector<2x32xf32> to vector<1x32xf32>
    %40 = arith.mulf %38, %39 : vector<1x32xf32>
    %41 = vector.extract_strided_slice %22 {offsets = [0, 0], sizes = [2, 32], strides = [1, 1]} : vector<30x32xf32> to vector<2x32xf32>
    %42 = vector.extract_strided_slice %22 {offsets = [2, 0], sizes = [2, 32], strides = [1, 1]} : vector<30x32xf32> to vector<2x32xf32>
    %43 = arith.mulf %42, %42 : vector<2x32xf32>
    %44 = arith.subf %41, %43 : vector<2x32xf32>
    %45 = arith.addf %41, %43 : vector<2x32xf32>
    %46 = arith.subf %45, %44 : vector<2x32xf32>
    %47 = vector.extract_strided_slice %46 {offsets = [0, 0], sizes = [1, 32], strides = [1, 1]} : vector<2x32xf32> to vector<1x32xf32>
    %48 = vector.extract_strided_slice %46 {offsets = [1, 0], sizes = [1, 32], strides = [1, 1]} : vector<2x32xf32> to vector<1x32xf32>
    %49 = arith.mulf %47, %48 : vector<1x32xf32>
    %50 = vector.extract_strided_slice %18 {offsets = [5, 0], sizes = [2, 32], strides = [1, 1]} : vector<30x32xf32> to vector<2x32xf32>
    %51 = vector.extract_strided_slice %18 {offsets = [7, 0], sizes = [2, 32], strides = [1, 1]} : vector<30x32xf32> to vector<2x32xf32>
    %52 = arith.mulf %51, %51 : vector<2x32xf32>
    %53 = arith.subf %50, %52 : vector<2x32xf32>
    %54 = arith.addf %50, %52 : vector<2x32xf32>
    %55 = arith.subf %54, %53 : vector<2x32xf32>
    %56 = vector.extract_strided_slice %55 {offsets = [0, 0], sizes = [1, 32], strides = [1, 1]} : vector<2x32xf32> to vector<1x32xf32>
    %57 = vector.extract_strided_slice %55 {offsets = [1, 0], sizes = [1, 32], strides = [1, 1]} : vector<2x32xf32> to vector<1x32xf32>
    %58 = arith.mulf %56, %57 : vector<1x32xf32>
    %59 = vector.extract_strided_slice %22 {offsets = [5, 0], sizes = [2, 32], strides = [1, 1]} : vector<30x32xf32> to vector<2x32xf32>
    %60 = vector.extract_strided_slice %22 {offsets = [7, 0], sizes = [2, 32], strides = [1, 1]} : vector<30x32xf32> to vector<2x32xf32>
    %61 = arith.mulf %60, %60 : vector<2x32xf32>
    %62 = arith.subf %59, %61 : vector<2x32xf32>
    %63 = arith.addf %59, %61 : vector<2x32xf32>
    %64 = arith.subf %63, %62 : vector<2x32xf32>
    %65 = vector.extract_strided_slice %64 {offsets = [0, 0], sizes = [1, 32], strides = [1, 1]} : vector<2x32xf32> to vector<1x32xf32>
    %66 = vector.extract_strided_slice %64 {offsets = [1, 0], sizes = [1, 32], strides = [1, 1]} : vector<2x32xf32> to vector<1x32xf32>
    %67 = arith.mulf %65, %66 : vector<1x32xf32>
    %68 = arith.maximumf %35, %44 : vector<2x32xf32>
    %69 = arith.minimumf %36, %45 : vector<2x32xf32>
    %70 = arith.subf %69, %68 : vector<2x32xf32>
    %cst_9 = arith.constant 0.000000e+00 : f32
    %71 = vector.broadcast %cst_9 : f32 to vector<2x32xf32>
    %72 = arith.maximumf %70, %71 : vector<2x32xf32>
    %73 = vector.extract_strided_slice %72 {offsets = [0, 0], sizes = [1, 32], strides = [1, 1]} : vector<2x32xf32> to vector<1x32xf32>
    %74 = vector.extract_strided_slice %72 {offsets = [1, 0], sizes = [1, 32], strides = [1, 1]} : vector<2x32xf32> to vector<1x32xf32>
    %75 = arith.mulf %73, %74 : vector<1x32xf32>
    %76 = arith.addf %40, %49 : vector<1x32xf32>
    %77 = arith.subf %76, %75 : vector<1x32xf32>
    %cst_10 = arith.constant 0.000000e+00 : f32
    %78 = vector.broadcast %cst_10 : f32 to vector<1x32xf32>
    %79 = arith.cmpf one, %77, %78 : vector<1x32xf32>
    %cst_11 = arith.constant 1.000000e+00 : f32
    %80 = vector.broadcast %cst_11 : f32 to vector<1x32xf32>
    %81 = arith.select %79, %77, %80 : vector<1x32xi1>, vector<1x32xf32>
    %82 = arith.divf %75, %81 : vector<1x32xf32>
    %83 = arith.maximumf %35, %62 : vector<2x32xf32>
    %84 = arith.minimumf %36, %63 : vector<2x32xf32>
    %85 = arith.subf %84, %83 : vector<2x32xf32>
    %cst_12 = arith.constant 0.000000e+00 : f32
    %86 = vector.broadcast %cst_12 : f32 to vector<2x32xf32>
    %87 = arith.maximumf %85, %86 : vector<2x32xf32>
    %88 = vector.extract_strided_slice %87 {offsets = [0, 0], sizes = [1, 32], strides = [1, 1]} : vector<2x32xf32> to vector<1x32xf32>
    %89 = vector.extract_strided_slice %87 {offsets = [1, 0], sizes = [1, 32], strides = [1, 1]} : vector<2x32xf32> to vector<1x32xf32>
    %90 = arith.mulf %88, %89 : vector<1x32xf32>
    %91 = arith.addf %40, %67 : vector<1x32xf32>
    %92 = arith.subf %91, %90 : vector<1x32xf32>
    %cst_13 = arith.constant 0.000000e+00 : f32
    %93 = vector.broadcast %cst_13 : f32 to vector<1x32xf32>
    %94 = arith.cmpf one, %92, %93 : vector<1x32xf32>
    %cst_14 = arith.constant 1.000000e+00 : f32
    %95 = vector.broadcast %cst_14 : f32 to vector<1x32xf32>
    %96 = arith.select %94, %92, %95 : vector<1x32xi1>, vector<1x32xf32>
    %97 = arith.divf %90, %96 : vector<1x32xf32>
    %98 = arith.maximumf %53, %44 : vector<2x32xf32>
    %99 = arith.minimumf %54, %45 : vector<2x32xf32>
    %100 = arith.subf %99, %98 : vector<2x32xf32>
    %cst_15 = arith.constant 0.000000e+00 : f32
    %101 = vector.broadcast %cst_15 : f32 to vector<2x32xf32>
    %102 = arith.maximumf %100, %101 : vector<2x32xf32>
    %103 = vector.extract_strided_slice %102 {offsets = [0, 0], sizes = [1, 32], strides = [1, 1]} : vector<2x32xf32> to vector<1x32xf32>
    %104 = vector.extract_strided_slice %102 {offsets = [1, 0], sizes = [1, 32], strides = [1, 1]} : vector<2x32xf32> to vector<1x32xf32>
    %105 = arith.mulf %103, %104 : vector<1x32xf32>
    %106 = arith.addf %58, %49 : vector<1x32xf32>
    %107 = arith.subf %106, %105 : vector<1x32xf32>
    %cst_16 = arith.constant 0.000000e+00 : f32
    %108 = vector.broadcast %cst_16 : f32 to vector<1x32xf32>
    %109 = arith.cmpf one, %107, %108 : vector<1x32xf32>
    %cst_17 = arith.constant 1.000000e+00 : f32
    %110 = vector.broadcast %cst_17 : f32 to vector<1x32xf32>
    %111 = arith.select %109, %107, %110 : vector<1x32xi1>, vector<1x32xf32>
    %112 = arith.divf %105, %111 : vector<1x32xf32>
    %113 = arith.maximumf %53, %62 : vector<2x32xf32>
    %114 = arith.minimumf %54, %63 : vector<2x32xf32>
    %115 = arith.subf %114, %113 : vector<2x32xf32>
    %cst_18 = arith.constant 0.000000e+00 : f32
    %116 = vector.broadcast %cst_18 : f32 to vector<2x32xf32>
    %117 = arith.maximumf %115, %116 : vector<2x32xf32>
    %118 = vector.extract_strided_slice %117 {offsets = [0, 0], sizes = [1, 32], strides = [1, 1]} : vector<2x32xf32> to vector<1x32xf32>
    %119 = vector.extract_strided_slice %117 {offsets = [1, 0], sizes = [1, 32], strides = [1, 1]} : vector<2x32xf32> to vector<1x32xf32>
    %120 = arith.mulf %118, %119 : vector<1x32xf32>
    %121 = arith.addf %58, %67 : vector<1x32xf32>
    %122 = arith.subf %121, %120 : vector<1x32xf32>
    %cst_19 = arith.constant 0.000000e+00 : f32
    %123 = vector.broadcast %cst_19 : f32 to vector<1x32xf32>
    %124 = arith.cmpf one, %122, %123 : vector<1x32xf32>
    %cst_20 = arith.constant 1.000000e+00 : f32
    %125 = vector.broadcast %cst_20 : f32 to vector<1x32xf32>
    %126 = arith.select %124, %122, %125 : vector<1x32xi1>, vector<1x32xf32>
    %127 = arith.divf %120, %126 : vector<1x32xf32>
    %cst_21 = arith.constant 0.000000e+00 : f32
    %128 = vector.broadcast %cst_21 : f32 to vector<1x32xf32>
    %cst_22 = arith.constant 0.000000e+00 : f32
    %129 = vector.broadcast %cst_22 : f32 to vector<1x32xf32>
    %130 = arith.maximumf %82, %112 : vector<1x32xf32>
    %cst_23 = arith.constant 0.000000e+00 : f32
    %131 = vector.broadcast %cst_23 : f32 to vector<1x32xf32>
    %132 = arith.cmpf oge, %82, %130 : vector<1x32xf32>
    %cst_24 = arith.constant 0.000000e+00 : f32
    %133 = vector.broadcast %cst_24 : f32 to vector<1x32xf32>
    %134 = arith.cmpf oeq, %131, %133 : vector<1x32xf32>
    %135 = arith.andi %132, %134 : vector<1x32xi1>
    %cst_25 = arith.constant 1.000000e+00 : f32
    %cst_26 = arith.constant 0.000000e+00 : f32
    %136 = vector.broadcast %cst_25 : f32 to vector<1x32xf32>
    %137 = vector.broadcast %cst_26 : f32 to vector<1x32xf32>
    %138 = arith.select %135, %136, %137 : vector<1x32xi1>, vector<1x32xf32>
    %139 = arith.addf %131, %138 : vector<1x32xf32>
    %140 = arith.maximumf %128, %138 : vector<1x32xf32>
    %141 = arith.cmpf oge, %112, %130 : vector<1x32xf32>
    %cst_27 = arith.constant 0.000000e+00 : f32
    %142 = vector.broadcast %cst_27 : f32 to vector<1x32xf32>
    %143 = arith.cmpf oeq, %139, %142 : vector<1x32xf32>
    %144 = arith.andi %141, %143 : vector<1x32xi1>
    %cst_28 = arith.constant 1.000000e+00 : f32
    %cst_29 = arith.constant 0.000000e+00 : f32
    %145 = vector.broadcast %cst_28 : f32 to vector<1x32xf32>
    %146 = vector.broadcast %cst_29 : f32 to vector<1x32xf32>
    %147 = arith.select %144, %145, %146 : vector<1x32xi1>, vector<1x32xf32>
    %148 = arith.maximumf %129, %147 : vector<1x32xf32>
    %149 = arith.maximumf %97, %127 : vector<1x32xf32>
    %cst_30 = arith.constant 0.000000e+00 : f32
    %150 = vector.broadcast %cst_30 : f32 to vector<1x32xf32>
    %151 = arith.cmpf oge, %97, %149 : vector<1x32xf32>
    %cst_31 = arith.constant 0.000000e+00 : f32
    %152 = vector.broadcast %cst_31 : f32 to vector<1x32xf32>
    %153 = arith.cmpf oeq, %150, %152 : vector<1x32xf32>
    %154 = arith.andi %151, %153 : vector<1x32xi1>
    %cst_32 = arith.constant 1.000000e+00 : f32
    %cst_33 = arith.constant 0.000000e+00 : f32
    %155 = vector.broadcast %cst_32 : f32 to vector<1x32xf32>
    %156 = vector.broadcast %cst_33 : f32 to vector<1x32xf32>
    %157 = arith.select %154, %155, %156 : vector<1x32xi1>, vector<1x32xf32>
    %158 = arith.addf %150, %157 : vector<1x32xf32>
    %159 = arith.maximumf %140, %157 : vector<1x32xf32>
    %160 = arith.cmpf oge, %127, %149 : vector<1x32xf32>
    %cst_34 = arith.constant 0.000000e+00 : f32
    %161 = vector.broadcast %cst_34 : f32 to vector<1x32xf32>
    %162 = arith.cmpf oeq, %158, %161 : vector<1x32xf32>
    %163 = arith.andi %160, %162 : vector<1x32xi1>
    %cst_35 = arith.constant 1.000000e+00 : f32
    %cst_36 = arith.constant 0.000000e+00 : f32
    %164 = vector.broadcast %cst_35 : f32 to vector<1x32xf32>
    %165 = vector.broadcast %cst_36 : f32 to vector<1x32xf32>
    %166 = arith.select %163, %164, %165 : vector<1x32xi1>, vector<1x32xf32>
    %167 = arith.maximumf %148, %166 : vector<1x32xf32>
    %168 = arith.subf %18, %22 : vector<30x32xf32>
    %169 = arith.mulf %168, %168 : vector<30x32xf32>
    %170 = vector.extract_strided_slice %169 {offsets = [10, 0], sizes = [20, 32], strides = [1, 1]} : vector<30x32xf32> to vector<20x32xf32>
    %cst_37 = arith.constant dense<0.000000e+00> : vector<32xf32>
    %171 = vector.multi_reduction <add>, %170, %cst_37 [0] : vector<20x32xf32> to vector<32xf32>
    %172 = vector.shape_cast %171 : vector<32xf32> to vector<1x32xf32>
    %173 = arith.mulf %27, %172 : vector<1x32xf32>
    %174 = arith.mulf %27, %159 : vector<1x32xf32>
    %175 = vector.extract_strided_slice %169 {offsets = [4, 0], sizes = [1, 32], strides = [1, 1]} : vector<30x32xf32> to vector<1x32xf32>
    %cst_38 = arith.constant 5.000000e-01 : f32
    %176 = vector.broadcast %cst_38 : f32 to vector<1x32xf32>
    %177 = arith.mulf %176, %31 : vector<1x32xf32>
    %178 = arith.addf %177, %174 : vector<1x32xf32>
    %179 = arith.mulf %178, %175 : vector<1x32xf32>
    %180 = arith.addf %173, %179 : vector<1x32xf32>
    %cst_39 = arith.constant 5.000000e+00 : f32
    %181 = vector.broadcast %cst_39 : f32 to vector<1x32xf32>
    %182 = arith.mulf %181, %174 : vector<1x32xf32>
    %183 = vector.extract_strided_slice %169 {offsets = [0, 0], sizes = [4, 32], strides = [1, 1]} : vector<30x32xf32> to vector<4x32xf32>
    %cst_40 = arith.constant dense<0.000000e+00> : vector<32xf32>
    %184 = vector.multi_reduction <add>, %183, %cst_40 [0] : vector<4x32xf32> to vector<32xf32>
    %185 = vector.shape_cast %184 : vector<32xf32> to vector<1x32xf32>
    %186 = arith.mulf %182, %185 : vector<1x32xf32>
    %187 = arith.addf %180, %186 : vector<1x32xf32>
    %188 = arith.mulf %27, %167 : vector<1x32xf32>
    %189 = vector.extract_strided_slice %169 {offsets = [9, 0], sizes = [1, 32], strides = [1, 1]} : vector<30x32xf32> to vector<1x32xf32>
    %cst_41 = arith.constant 5.000000e-01 : f32
    %190 = vector.broadcast %cst_41 : f32 to vector<1x32xf32>
    %191 = arith.mulf %190, %31 : vector<1x32xf32>
    %192 = arith.addf %191, %188 : vector<1x32xf32>
    %193 = arith.mulf %192, %189 : vector<1x32xf32>
    %194 = arith.addf %187, %193 : vector<1x32xf32>
    %cst_42 = arith.constant 5.000000e+00 : f32
    %195 = vector.broadcast %cst_42 : f32 to vector<1x32xf32>
    %196 = arith.mulf %195, %188 : vector<1x32xf32>
    %197 = vector.extract_strided_slice %169 {offsets = [5, 0], sizes = [4, 32], strides = [1, 1]} : vector<30x32xf32> to vector<4x32xf32>
    %cst_43 = arith.constant dense<0.000000e+00> : vector<32xf32>
    %198 = vector.multi_reduction <add>, %197, %cst_43 [0] : vector<4x32xf32> to vector<32xf32>
    %199 = vector.shape_cast %198 : vector<32xf32> to vector<1x32xf32>
    %200 = arith.mulf %196, %199 : vector<1x32xf32>
    %201 = arith.addf %194, %200 : vector<1x32xf32>
    %202 = vector.shape_cast %201 : vector<1x32xf32> to vector<1x1x32xf32>
    %c0_44 = arith.constant 0 : index
    %c0_45 = arith.constant 0 : index
    %c0_46 = arith.constant 0 : index
    %203 = vector.load %arg3[%c0_44, %c0_45, %c0_46] : memref<1x1x32xf32, #tpu.memory_space<vmem>>, vector<1x1x32xf32>
    tpu.vector_store %arg3[%c0_44, %c0_45, %c0_46], %202 {strides = array<i32>} : memref<1x1x32xf32, #tpu.memory_space<vmem>>, vector<1x1x32xf32>,
    return
  }
  func.func @transform_0(%arg0: i32) -> (i32, i32) {
    %c0_i32 = arith.constant 0 : i32
    %c0_i32_0 = arith.constant 0 : i32
    return %arg0, %c0_i32 : i32, i32
  }
  func.func @transform_1(%arg0: i32) -> (i32, i32) {
    %c0_i32 = arith.constant 0 : i32
    %c0_i32_0 = arith.constant 0 : i32
    return %arg0, %c0_i32 : i32, i32
  }
  func.func @transform_2(%arg0: i32) -> (i32, i32, i32) {
    %c0_i32 = arith.constant 0 : i32
    %c0_i32_0 = arith.constant 0 : i32
    %c0_i32_1 = arith.constant 0 : i32
    return %arg0, %c0_i32, %c0_i32_0 : i32, i32, i32
  }
}

</mosaic_0001>

<llo_original>
// kernel: tpu_custom_call.1
$region0: #{tpu_custom_call.1}
  #allocation0 [shape = 'u32[]', space=smem, size = 0x4, offset = 0x4, fixed_abs, tag = 'smem constant byte address 0x4 - core index']
  #allocation1 [shape = 'u32[144,128]{1,0:T(1,128)}', space=vmem, size = 0x12000, scoped, tag = 'internal scratch']
  %s0 = inlined_call_operand.hbm [shape: f32[32,30], index: 0, kind: input, shape index: {}]
  %s1 = inlined_call_operand.hbm [shape: f32[32,30], index: 1, kind: input, shape index: {}]
  %s2 = inlined_call_operand.hbm [shape: f32[1,1,32], index: 2, kind: output, shape index: {}]
  %s3 = sld [smem:[#allocation0]]
  $region26: #{tpu_custom_call.1} parent=0
    _
  %s5 = ssub.s32 1, %s3
  %s6 = scalar_select 0, %s5, %s3
  $region1: #{tpu_custom_call.1} parent=0
    #allocation2 [shape = 'u8[16384]{0}', space=vmem, size = 0x4000, scoped, tag = 'input window, operand 0, single buffered']
    #allocation3 [shape = 's32[1]{0}', space=sflag, size = 0x4, scoped, tag = 'scoped memory for tpu_custom_call.1']
    #allocation4 [shape = 's32[1]{0}', space=sflag, size = 0x4, scoped, tag = 'scoped memory for tpu_custom_call.1']
    #allocation5 [shape = 'u8[16384]{0}', space=vmem, size = 0x4000, scoped, tag = 'input window, operand 1, single buffered']
    #allocation6 [shape = 's32[1]{0}', space=sflag, size = 0x4, scoped, tag = 'scoped memory for tpu_custom_call.1']
    #allocation7 [shape = 'u8[512]{0}', space=vmem, size = 0x400, scoped, tag = 'output window, operand 0, single buffered']
    %7 = vsyncpa [#allocation3], 0
    %8 = vsyncpa [#allocation6], 0
    %9 = vsyncpa [#allocation4], 0
    // Predicated region
    $region2: #{tpu_custom_call.1} parent=1 // pred_check
      _
    $region3: #{tpu_custom_call.1} parent=1 // pred_check_branch
      %11 = sbr.rel (0) target = $region5
    $region4: #{tpu_custom_call.1} parent=1 // pred_region
      %s13 = ssub.s32 512, 512
      %14 = vsyncadd [#allocation3], %s13
      %s15 = sshll.u32 [#allocation2], 4
      %s16 = int_to_ptr.vmem [resolvable:$true] %s15
      %21 = dma.hbm_to_vmem [thread:$0]  %s0, 512, %s16, [#allocation3], 128, 128, 8
    $region5: #{tpu_custom_call.1} parent=1 // pred_fallthru
      _
    // Predicated region
    $region6: #{tpu_custom_call.1} parent=1 // pred_check
      _
    $region7: #{tpu_custom_call.1} parent=1 // pred_check_branch
      %23 = sbr.rel (0) target = $region9
    $region8: #{tpu_custom_call.1} parent=1 // pred_region
      %s25 = ssub.s32 512, 512
      %26 = vsyncadd [#allocation6], %s25
      %s27 = sshll.u32 [#allocation5], 4
      %s28 = int_to_ptr.vmem [resolvable:$true] %s27
      %33 = dma.hbm_to_vmem [thread:$0]  %s1, 512, %s28, [#allocation6], 128, 128, 8
    $region9: #{tpu_custom_call.1} parent=1 // pred_fallthru
      _
    // Predicated region
    $region10: #{tpu_custom_call.1} parent=1 // pred_check
      _
    $region11: #{tpu_custom_call.1} parent=1 // pred_check_branch
      %35 = sbr.rel (0) target = $region13
    $region12: #{tpu_custom_call.1} parent=1 // pred_region
      %36 = dma.done [#allocation3], 512
    $region13: #{tpu_custom_call.1} parent=1 // pred_fallthru
      _
    // Predicated region
    $region14: #{tpu_custom_call.1} parent=1 // pred_check
      _
    $region15: #{tpu_custom_call.1} parent=1 // pred_check_branch
      %38 = sbr.rel (0) target = $region17
    $region16: #{tpu_custom_call.1} parent=1 // pred_region
      %39 = dma.done [#allocation6], 512
    $region17: #{tpu_custom_call.1} parent=1 // pred_fallthru
      _
    %v40 = vld [vmem:[#allocation2] sm:$0xff]
    %v41 = vld [vmem:[#allocation2 + $0x8] sm:$0xff]
    %v42 = vld [vmem:[#allocation2 + $0x10] sm:$0xff]
    %v43 = vld [vmem:[#allocation2 + $0x18] sm:$0xff]
    %v44 = vld [vmem:[#allocation5] sm:$0xff]
    %v45 = vld [vmem:[#allocation5 + $0x8] sm:$0xff]
    %v46 = vld [vmem:[#allocation5 + $0x10] sm:$0xff]
    %v47 = vld [vmem:[#allocation5 + $0x18] sm:$0xff]
    %v48 = vlaneseq
    %v49 = vshrl.u32 %v48, 7
    %v50 = vadd.s32 %v49, 8
    %v51 = vadd.s32 %v49, 16
    %v52 = vadd.s32 %v49, 24
    %v53 = vlaneseq
    %v54 = vand.u32 %v53, 127
    %vm55 = vcmp.eq.s32.totalorder %v49, %v54
    %vm56 = vcmp.eq.s32.totalorder %v50, %v54
    %vm57 = vcmp.eq.s32.totalorder %v51, %v54
    %vm58 = vcmp.eq.s32.totalorder %v52, %v54
    %v59 = vsel %vm55, 1, 0
    %v60 = vsel %vm56, 1, 0
    %v61 = vsel %vm57, 1, 0
    %v62 = vsel %vm58, 1, 0
    %v63 = vcvt.s32.f32 %v59
    %v64 = vcvt.s32.f32 %v60
    %v65 = vcvt.s32.f32 %v61
    %v66 = vcvt.s32.f32 %v62
    %vm67 = vcmask 244736
    %v69 = vsel %vm67, %v63, 0
    %v72 = vsel %vm67, %v64, 0
    %v75 = vsel %vm67, %v65, 0
    %v78 = vsel %vm67, %v66, 0
    %v81 = vsel %vm67, %v40, 0
    %v84 = vsel %vm67, %v41, 0
    %v87 = vsel %vm67, %v42, 0
    %v90 = vsel %vm67, %v43, 0
    %92 = vmatprep.subr.mxu0 0.0
    %93 = vmatpush1.xpose.msra.mxu0 %v81
    %94 = vmatprep.subr.mxu0 0.0
    %95 = vmatpush1.xpose.msra.mxu0 %v84
    %96 = vmatprep.subr.mxu0 0.0
    %97 = vmatpush1.xpose.msra.mxu0 %v87
    %98 = vmatprep.subr.mxu0 0.0
    %99 = vmatpush1.xpose.msra.mxu0 %v90
    %100 = vmatprep.subr.mxu0 0.0
    %101 = vmatpush1.xpose.msra.mxu0 0.0
    %102 = vmatprep.subr.mxu0 0.0
    %103 = vmatpush1.xpose.msra.mxu0 0.0
    %104 = vmatprep.subr.mxu0 0.0
    %105 = vmatpush1.xpose.msra.mxu0 0.0
    %106 = vmatprep.subr.mxu0 0.0
    %107 = vmatpush1.xpose.msra.mxu0 0.0
    %108 = vmatprep.subr.mxu0 0.0
    %109 = vmatpush1.xpose.msra.mxu0 0.0
    %110 = vmatprep.subr.mxu0 0.0
    %111 = vmatpush1.xpose.msra.mxu0 0.0
    %112 = vmatprep.subr.mxu0 0.0
    %113 = vmatpush1.xpose.msra.mxu0 0.0
    %114 = vmatprep.subr.mxu0 0.0
    %115 = vmatpush1.xpose.msra.mxu0 0.0
    %116 = vmatprep.subr.mxu0 0.0
    %117 = vmatpush1.xpose.msra.mxu0 0.0
    %118 = vmatprep.subr.mxu0 0.0
    %119 = vmatpush1.xpose.msra.mxu0 0.0
    %120 = vmatprep.subr.mxu0 0.0
    %121 = vmatpush1.xpose.msra.mxu0 0.0
    %122 = vmatprep.subr.mxu0 0.0
    %123 = vmatpush1.xpose.msra.mxu0 0.0
    %124 = vmatprep.subr.mxu0 0.0
    %125 = vmatpush1.xpose.msra.mxu0 0.0
    %126 = vmatprep.subr.mxu0 0.0
    %127 = vmatpush1.xpose.msra.mxu0 0.0
    %128 = vmatprep.subr.mxu0 0.0
    %129 = vmatpush1.xpose.msra.mxu0 0.0
    %130 = vmatprep.subr.mxu0 0.0
    %131 = vmatpush1.xpose.msra.mxu0 0.0
    %132 = vmatprep.subr.mxu0 0.0
    %133 = vmatpush1.xpose.msra.mxu0 0.0
    %134 = vmatprep.subr.mxu0 0.0
    %135 = vmatpush1.xpose.msra.mxu0 0.0
    %136 = vmatprep.subr.mxu0 0.0
    %137 = vmatpush1.xpose.msra.mxu0 0.0
    %138 = vmatprep.subr.mxu0 0.0
    %139 = vmatpush1.xpose.msra.mxu0 0.0
    %140 = vmatprep.subr.mxu0 0.0
    %141 = vmatpush1.xpose.msra.mxu0 0.0
    %142 = vmatprep.subr.mxu0 0.0
    %143 = vmatpush1.xpose.msra.mxu0 0.0
    %144 = vmatprep.subr.mxu0 0.0
    %145 = vmatpush1.xpose.msra.mxu0 0.0
    %146 = vmatprep.subr.mxu0 0.0
    %147 = vmatpush1.xpose.msra.mxu0 0.0
    %148 = vmatprep.subr.mxu0 0.0
    %149 = vmatpush1.xpose.msra.mxu0 0.0
    %150 = vmatprep.subr.mxu0 0.0
    %151 = vmatpush1.xpose.msra.mxu0 0.0
    %152 = vmatprep.subr.mxu0 0.0
    %153 = vmatpush1.xpose.msra.mxu0 0.0
    %154 = vmatprep.subr.mxu0 0.0
    %155 = vmatpush1.xpose.msra.mxu0 0.0
    %156 = vmatprep.mubr.f32.mxu0 0.0
    %157 = vmatmul.mubr.f32.gmra.mrb[0].mxu0 %v69
    %v158 = vpop.f32.mrb[0].mxu0
    %v159 = vadd.f32 0.0, %v158
    %v160 = vpop.f32.mrb[0].mxu0
    %161 = vmatprep.mubr.f32.mxu0 0.0
    %162 = vmatmul.mubr.f32.gmra.mrb[0].mxu0 %v72
    %v163 = vpop.f32.mrb[0].mxu0
    %v164 = vadd.f32 0.0, %v163
    %v165 = vpop.f32.mrb[0].mxu0
    %166 = vmatprep.mubr.f32.mxu0 0.0
    %167 = vmatmul.mubr.f32.gmra.mrb[0].mxu0 %v75
    %v168 = vpop.f32.mrb[0].mxu0
    %v169 = vadd.f32 0.0, %v168
    %v170 = vpop.f32.mrb[0].mxu0
    %171 = vmatprep.mubr.f32.mxu0 0.0
    %172 = vmatmul.mubr.f32.gmra.mrb[0].mxu0 %v78
    %v173 = vpop.f32.mrb[0].mxu0
    %v174 = vadd.f32 0.0, %v173
    %v175 = vpop.f32.mrb[0].mxu0
    %176 = vdwg.mxu0
    %v178 = vsel %vm67, %v44, 0
    %v181 = vsel %vm67, %v45, 0
    %v184 = vsel %vm67, %v46, 0
    %v187 = vsel %vm67, %v47, 0
    %189 = vmatprep.subr.mxu0 0.0
    %190 = vmatpush1.xpose.msra.mxu0 %v178
    %191 = vmatprep.subr.mxu0 0.0
    %192 = vmatpush1.xpose.msra.mxu0 %v181
    %193 = vmatprep.subr.mxu0 0.0
    %194 = vmatpush1.xpose.msra.mxu0 %v184
    %195 = vmatprep.subr.mxu0 0.0
    %196 = vmatpush1.xpose.msra.mxu0 %v187
    %197 = vmatprep.subr.mxu0 0.0
    %198 = vmatpush1.xpose.msra.mxu0 0.0
    %199 = vmatprep.subr.mxu0 0.0
    %200 = vmatpush1.xpose.msra.mxu0 0.0
    %201 = vmatprep.subr.mxu0 0.0
    %202 = vmatpush1.xpose.msra.mxu0 0.0
    %203 = vmatprep.subr.mxu0 0.0
    %204 = vmatpush1.xpose.msra.mxu0 0.0
    %205 = vmatprep.subr.mxu0 0.0
    %206 = vmatpush1.xpose.msra.mxu0 0.0
    %207 = vmatprep.subr.mxu0 0.0
    %208 = vmatpush1.xpose.msra.mxu0 0.0
    %209 = vmatprep.subr.mxu0 0.0
    %210 = vmatpush1.xpose.msra.mxu0 0.0
    %211 = vmatprep.subr.mxu0 0.0
    %212 = vmatpush1.xpose.msra.mxu0 0.0
    %213 = vmatprep.subr.mxu0 0.0
    %214 = vmatpush1.xpose.msra.mxu0 0.0
    %215 = vmatprep.subr.mxu0 0.0
    %216 = vmatpush1.xpose.msra.mxu0 0.0
    %217 = vmatprep.subr.mxu0 0.0
    %218 = vmatpush1.xpose.msra.mxu0 0.0
    %219 = vmatprep.subr.mxu0 0.0
    %220 = vmatpush1.xpose.msra.mxu0 0.0
    %221 = vmatprep.subr.mxu0 0.0
    %222 = vmatpush1.xpose.msra.mxu0 0.0
    %223 = vmatprep.subr.mxu0 0.0
    %224 = vmatpush1.xpose.msra.mxu0 0.0
    %225 = vmatprep.subr.mxu0 0.0
    %226 = vmatpush1.xpose.msra.mxu0 0.0
    %227 = vmatprep.subr.mxu0 0.0
    %228 = vmatpush1.xpose.msra.mxu0 0.0
    %229 = vmatprep.subr.mxu0 0.0
    %230 = vmatpush1.xpose.msra.mxu0 0.0
    %231 = vmatprep.subr.mxu0 0.0
    %232 = vmatpush1.xpose.msra.mxu0 0.0
    %233 = vmatprep.subr.mxu0 0.0
    %234 = vmatpush1.xpose.msra.mxu0 0.0
    %235 = vmatprep.subr.mxu0 0.0
    %236 = vmatpush1.xpose.msra.mxu0 0.0
    %237 = vmatprep.subr.mxu0 0.0
    %238 = vmatpush1.xpose.msra.mxu0 0.0
    %239 = vmatprep.subr.mxu0 0.0
    %240 = vmatpush1.xpose.msra.mxu0 0.0
    %241 = vmatprep.subr.mxu0 0.0
    %242 = vmatpush1.xpose.msra.mxu0 0.0
    %243 = vmatprep.subr.mxu0 0.0
    %244 = vmatpush1.xpose.msra.mxu0 0.0
    %245 = vmatprep.subr.mxu0 0.0
    %246 = vmatpush1.xpose.msra.mxu0 0.0
    %247 = vmatprep.subr.mxu0 0.0
    %248 = vmatpush1.xpose.msra.mxu0 0.0
    %249 = vmatprep.subr.mxu0 0.0
    %250 = vmatpush1.xpose.msra.mxu0 0.0
    %251 = vmatprep.subr.mxu0 0.0
    %252 = vmatpush1.xpose.msra.mxu0 0.0
    %253 = vmatprep.mubr.f32.mxu0 0.0
    %254 = vmatmul.mubr.f32.gmra.mrb[0].mxu0 %v69
    %v255 = vpop.f32.mrb[0].mxu0
    %v256 = vadd.f32 0.0, %v255
    %v257 = vpop.f32.mrb[0].mxu0
    %258 = vmatprep.mubr.f32.mxu0 0.0
    %259 = vmatmul.mubr.f32.gmra.mrb[0].mxu0 %v72
    %v260 = vpop.f32.mrb[0].mxu0
    %v261 = vadd.f32 0.0, %v260
    %v262 = vpop.f32.mrb[0].mxu0
    %263 = vmatprep.mubr.f32.mxu0 0.0
    %264 = vmatmul.mubr.f32.gmra.mrb[0].mxu0 %v75
    %v265 = vpop.f32.mrb[0].mxu0
    %v266 = vadd.f32 0.0, %v265
    %v267 = vpop.f32.mrb[0].mxu0
    %268 = vmatprep.mubr.f32.mxu0 0.0
    %269 = vmatmul.mubr.f32.gmra.mrb[0].mxu0 %v78
    %v270 = vpop.f32.mrb[0].mxu0
    %v271 = vadd.f32 0.0, %v270
    %v272 = vpop.f32.mrb[0].mxu0
    %273 = vdwg.mxu0
    %s274 = smul.u32 0, 32
    %v275 = vstv %s274
    %v276 = vadd.s32 %v275, %v54
    %vm277 = vcmp.lt.s32.totalorder %v276, 32
    %v278 = vsel %vm277, 1, 0
    %vm279 = vcmp.eq.s32.totalorder %v278, 1
    %v280 = vsel %vm279, %v159, 0.0
    %v281 = vsel %vm279, %v164, 0.0
    %v282 = vsel %vm279, %v169, 0.0
    %v283 = vsel %vm279, %v174, 0.0
    %v284 = vsel %vm279, %v256, 0.0
    %v285 = vsel %vm279, %v261, 0.0
    %v286 = vsel %vm279, %v266, 0.0
    %v287 = vsel %vm279, %v271, 0.0
    %vm288 = vcmp.gt.f32.partialorder %v284, 0.0
    %v289 = vsel %vm288, 1, 0
    %v290 = vcvt.s32.f32 %v289
    %vm291 = vcmp.eq.f32.partialorder %v284, 0.0
    %v292 = vsel %vm291, 1, 0
    %v293 = vcvt.s32.f32 %v292
    %v294 = vmul.f32 %v280, %v280
    %v296 = vrot.slane %v294, 2
    %v298 = vsub.f32 %v280, %v296
    %v299 = vadd.f32 %v280, %v296
    %v300 = vsub.f32 %v299, %v298
    %v302 = vrot.slane %v300, 1
    %v304 = vmul.f32 %v300, %v302
    %v305 = vmul.f32 %v284, %v284
    %v307 = vrot.slane %v305, 2
    %v309 = vsub.f32 %v284, %v307
    %v310 = vadd.f32 %v284, %v307
    %v311 = vsub.f32 %v310, %v309
    %v313 = vrot.slane %v311, 1
    %v315 = vmul.f32 %v311, %v313
    %v316 = vmul.f32 %v281, %v281
    %vm318 = vcmask 1045504
    %v319 = vrot.slane %v316, 2
    %v320 = vsel %vm318, %v296, %v319
    %v322 = vsub.f32 %v280, %v320
    %v323 = vadd.f32 %v280, %v320
    %v324 = vsub.f32 %v323, %v322
    %v326 = vrot.slane %v324, 1
    %v328 = vmul.f32 %v324, %v326
    %v329 = vmul.f32 %v285, %v285
    %v331 = vrot.slane %v329, 2
    %v332 = vsel %vm318, %v307, %v331
    %v334 = vsub.f32 %v284, %v332
    %v335 = vadd.f32 %v284, %v332
    %v336 = vsub.f32 %v335, %v334
    %v338 = vrot.slane %v336, 1
    %v340 = vmul.f32 %v336, %v338
    %v341 = vmax.f32 %v298, %v309
    %v342 = vmin.f32 %v299, %v310
    %v343 = vsub.f32 %v342, %v341
    %v344 = vmax.f32 %v343, 0.0
    %v346 = vrot.slane %v344, 1
    %v348 = vmul.f32 %v344, %v346
    %v349 = vadd.f32 %v304, %v315
    %v350 = vsub.f32 %v349, %v348
    %vm351 = vcmp.ne.f32.partialorder %v350, 0.0
    %v352 = vsel %vm351, %v350, 1.0
    %v353 = vrcp.pop %v352
    %v354 = vmul.f32 %v348, %v353
    %v356 = vrot.slane %v334, 5
    %v358 = vmax.f32 %v298, %v356
    %v360 = vrot.slane %v335, 5
    %v362 = vmin.f32 %v299, %v360
    %v363 = vsub.f32 %v362, %v358
    %v364 = vmax.f32 %v363, 0.0
    %v366 = vrot.slane %v364, 1
    %v368 = vmul.f32 %v364, %v366
    %v370 = vrot.slane %v340, 5
    %v372 = vadd.f32 %v304, %v370
    %v373 = vsub.f32 %v372, %v368
    %vm374 = vcmp.ne.f32.partialorder %v373, 0.0
    %v375 = vsel %vm374, %v373, 1.0
    %v376 = vrcp.pop %v375
    %v377 = vmul.f32 %v368, %v376
    %v379 = vrot.slane %v309, 3
    %v381 = vmax.f32 %v322, %v379
    %v383 = vrot.slane %v310, 3
    %v385 = vmin.f32 %v323, %v383
    %v386 = vsub.f32 %v385, %v381
    %v387 = vmax.f32 %v386, 0.0
    %v389 = vrot.slane %v387, 1
    %v391 = vmul.f32 %v387, %v389
    %v393 = vrot.slane %v315, 3
    %v395 = vadd.f32 %v328, %v393
    %v396 = vsub.f32 %v395, %v391
    %vm397 = vcmp.ne.f32.partialorder %v396, 0.0
    %v398 = vsel %vm397, %v396, 1.0
    %v399 = vrcp.pop %v398
    %v400 = vmul.f32 %v391, %v399
    %v401 = vmax.f32 %v322, %v334
    %v402 = vmin.f32 %v323, %v335
    %v403 = vsub.f32 %v402, %v401
    %v404 = vmax.f32 %v403, 0.0
    %v406 = vrot.slane %v404, 1
    %v408 = vmul.f32 %v404, %v406
    %v409 = vadd.f32 %v328, %v340
    %v410 = vsub.f32 %v409, %v408
    %vm411 = vcmp.ne.f32.partialorder %v410, 0.0
    %v412 = vsel %vm411, %v410, 1.0
    %v413 = vrcp.pop %v412
    %v414 = vmul.f32 %v408, %v413
    %v416 = vrot.slane %v400, 5
    %v418 = vmax.f32 %v354, %v416
    %vm419 = vcmp.ge.f32.partialorder %v354, %v418
    %vm420 = vcmp.eq.f32.partialorder 0.0, 0.0
    %vm421 = vmand %vm419, %vm420
    %v422 = vsel %vm421, 1.0, 0.0
    %v423 = vadd.f32 %v422, 0.0
    %v424 = vmax.f32 %v422, 0.0
    %v426 = vrot.slane %v418, 3
    %vm428 = vcmp.ge.f32.partialorder %v400, %v426
    %vm429 = vcmp.eq.f32.partialorder %v423, 0.0
    %v430 = vsel %vm429, 1, 0
    %v431 = vrot.slane %v430, 3
    %vm432 = vcmp.ne.s32.totalorder %v431, 0
    %vm433 = vmand %vm428, %vm432
    %v434 = vsel %vm433, 1.0, 0.0
    %v435 = vmax.f32 %v434, 0.0
    %v437 = vrot.slane %v414, 5
    %v439 = vmax.f32 %v377, %v437
    %vm440 = vcmp.ge.f32.partialorder %v377, %v439
    %vm441 = vmand %vm440, %vm420
    %v442 = vsel %vm441, 1.0, 0.0
    %v443 = vadd.f32 %v442, 0.0
    %v444 = vmax.f32 %v424, %v442
    %v446 = vrot.slane %v439, 3
    %vm448 = vcmp.ge.f32.partialorder %v414, %v446
    %vm449 = vcmp.eq.f32.partialorder %v443, 0.0
    %v450 = vsel %vm449, 1, 0
    %v451 = vrot.slane %v450, 3
    %vm452 = vcmp.ne.s32.totalorder %v451, 0
    %vm453 = vmand %vm448, %vm452
    %v454 = vsel %vm453, 1.0, 0.0
    %v455 = vmax.f32 %v435, %v454
    %v456 = vsub.f32 %v280, %v284
    %v457 = vsub.f32 %v281, %v285
    %v458 = vsub.f32 %v282, %v286
    %v459 = vsub.f32 %v283, %v287
    %v460 = vmul.f32 %v456, %v456
    %v461 = vmul.f32 %v457, %v457
    %v462 = vmul.f32 %v458, %v458
    %v463 = vmul.f32 %v459, %v459
    %v467 = vrot.slane %v461, 2
    %v468 = vrot.slane %v462, 2
    %v469 = vsel %vm318, %v467, %v468
    %v470 = vrot.slane %v463, 2
    %v471 = vsel %vm318, %v468, %v470
    %vm475 = vcmask 261120
    %v476 = vsel %vm475, %v469, 0.0
    %v477 = vsel %vm475, %v471, 0.0
    %v478 = vadd.f32 %v476, %v477
    %vm479 = vcmask 257024
    %v480 = vsel %vm479, %v470, 0.0
    %v481 = vadd.f32 %v478, %v480
    %v482 = vrot.slane %v481, 4
    %v483 = vadd.f32 %v481, %v482
    %v484 = vrot.slane %v483, 2
    %v485 = vadd.f32 %v483, %v484
    %v486 = vrot.slane %v485, 1
    %v487 = vadd.f32 %v485, %v486
    %v488 = vmul.f32 %v290, %v487
    %v490 = vrot.slane %v444, 3
    %v492 = vmul.f32 %v290, %v490
    %v493 = vmul.f32 %v293, 0.5
    %v494 = vadd.f32 %v493, %v492
    %v496 = vrot.slane %v460, 7
    %v498 = vmul.f32 %v494, %v496
    %v499 = vadd.f32 %v488, %v498
    %v500 = vmul.f32 %v492, 5.0
    %v501 = vsel %vm479, %v460, 0.0
    %v502 = vrot.slane %v501, 4
    %v503 = vadd.f32 %v501, %v502
    %v504 = vrot.slane %v503, 2
    %v505 = vadd.f32 %v503, %v504
    %v506 = vrot.slane %v505, 1
    %v507 = vadd.f32 %v505, %v506
    %v508 = vmul.f32 %v500, %v507
    %v509 = vadd.f32 %v499, %v508
    %v510 = vmul.f32 %v290, %v455
    %v511 = vadd.f32 %v493, %v510
    %v512 = vrot.slane %v461, 4
    %v514 = vmul.f32 %v511, %v512
    %v515 = vadd.f32 %v509, %v514
    %v516 = vmul.f32 %v510, 5.0
    %vm517 = vcmask 1042432
    %v518 = vrot.slane %v460, 5
    %v519 = vrot.slane %v461, 5
    %v520 = vsel %vm517, %v518, %v519
    %v522 = vsel %vm479, %v520, 0.0
    %v523 = vrot.slane %v522, 4
    %v524 = vadd.f32 %v522, %v523
    %v525 = vrot.slane %v524, 2
    %v526 = vadd.f32 %v524, %v525
    %v527 = vrot.slane %v526, 1
    %v528 = vadd.f32 %v526, %v527
    %v529 = vmul.f32 %v516, %v528
    %v530 = vadd.f32 %v515, %v529
    %vm531 = vcmask 259077
    %532 = vst.msk [vmem:[#allocation7 - $0x5] sm:$0x20] %vm531, %v530
    // Predicated region
    $region18: #{tpu_custom_call.1} parent=1 // pred_check
      _
    $region19: #{tpu_custom_call.1} parent=1 // pred_check_branch
      %534 = sbr.rel (0) target = $region21
    $region20: #{tpu_custom_call.1} parent=1 // pred_region
      %s536 = ssub.s32 16, 16
      %537 = vsyncadd [#allocation4], %s536
      %s539 = sshll.u32 [#allocation7], 4
      %s540 = int_to_ptr.vmem [resolvable:$true] %s539
      %542 = dma.vmem_to_hbm [thread:$0]  %s540, 16, %s2, [#allocation4]
    $region21: #{tpu_custom_call.1} parent=1 // pred_fallthru
      _
    // Predicated region
    $region22: #{tpu_custom_call.1} parent=1 // pred_check
      _
    $region23: #{tpu_custom_call.1} parent=1 // pred_check_branch
      %544 = sbr.rel (0) target = $region25
    $region24: #{tpu_custom_call.1} parent=1 // pred_region
      %545 = dma.done [#allocation4], 16
    $region25: #{tpu_custom_call.1} parent=1 // pred_fallthru
      _
    %546 = vsyncpa [#allocation3], 1
    %547 = vsyncpa [#allocation6], 1
    %548 = vsyncpa [#allocation4], 1

</llo_original>
